<compile_context>
chip_gen: v5e
topology: v5e:2x2
jax: 0.10.0
libtpu: 0.0.40
codegen_flags: <defaults>
</compile_context>

<pallas_src>
import jax
import jax.numpy as jnp
from jax import lax
from jax.experimental import pallas as pl
from jax.experimental.pallas import tpu as pltpu

EPS = 1e-8
QMAX = 127.0    # 2**(8-1) - 1
QMIN = -128.0   # -2**(8-1)


# ----------------------------------------------------------------------------
# math helpers (usable both inside the Pallas kernel and in the JAX reference)
# ----------------------------------------------------------------------------
def _rms_norm(x, eps=EPS):
    """RMSNormFunction.forward: mean-centred, biased variance, clamped rsqrt."""
    mean = jnp.mean(x, axis=-1, keepdims=True)
    var = jnp.mean((x - mean) ** 2, axis=-1, keepdims=True)
    r = lax.rsqrt(jnp.maximum(var + eps, 1e-10))    # EUP rsqrt, not 1/sqrt on VALU
    return r * (x - mean)


def _quant_codes(x):
    """activation_quant(x, bits=8) split into integer codes + scalar scale.

    Codes are small integers in [-127, 127] -> exactly representable in bf16,
    so the matmul runs on the bf16 MXU path and the f32 scale is applied once
    after the dot (identical to torch's (codes*scale) @ sign(W).T).
    """
    x = jnp.where(jnp.isnan(x), 0.0, x)             # torch.nan_to_num(nan=0.0)
    amax = jnp.max(jnp.abs(x))                      # GLOBAL abs-max, as in torch
    scale = jnp.where((amax == 0.0) | jnp.isnan(amax), 1.0, amax / QMAX)
    codes = jnp.clip(jnp.round(x * (1.0 / scale)), QMIN, QMAX)
    return codes, scale


# ----------------------------------------------------------------------------
# Pallas kernel
# ----------------------------------------------------------------------------
def _glu_kernel(x_ref, wgu_ref, wd_ref, bgu_ref, bd_ref, o_ref):
    """Fused MatMulFreeGLU forward on one (N, D) slab.

    Weights arrive pre-ternarized + pre-transposed + gate/up fused, so the
    kernel issues exactly two bf16 MXU matmuls and no sign()/transpose work.
    """
    D = wd_ref.shape[1]

    # x = activation_quant(rms_norm(x)); requantization inside
    # matmul_free_linear is a numerical no-op on already-quantized values, so
    # quantize once and reuse the codes for both gate and up projections.
    y = _rms_norm(x_ref[...])
    q, s = _quant_codes(y)

    # single (N, D) @ (D, 2D) bf16 MXU pass for [W_g | W_u], biases fused.
    gu = jnp.dot(q.astype(jnp.bfloat16), wgu_ref[...],
                 preferred_element_type=jnp.float32) * s + bgu_ref[...]
    g = gu[:, :D]                                   # lane-aligned split (D % 128 == 0)
    u = gu[:, D:]
    g = g * jax.nn.sigmoid(g)                       # SiLU (sigmoid on EUP)
    p = g * u

    # matmul_free_linear(p_t, W_d): quantize p_t, second bf16 MXU pass.
    q2, s2 = _quant_codes(p)
    o_ref[...] = jnp.dot(q2.astype(jnp.bfloat16), wd_ref[...],
                         preferred_element_type=jnp.float32) * s2 + bd_ref[...]


# ----------------------------------------------------------------------------
# wrapper
# ----------------------------------------------------------------------------
def matmul_free_glu(x, W_g, W_u, W_d, b_g, b_u, b_d):
    """MatMulFreeGLU.forward.  x: (..., D); W_*: (D, D); b_*: (D,)."""
    *lead, D = x.shape
    N = 1
    for d in lead:
        N *= d
    xf = x.reshape(N, D).astype(jnp.float32)

    # Pre-ternarize + pre-transpose once, outside the kernel (sign values are
    # exact in bf16).  Gate/up weights fused along the output dimension.
    w_gu = jnp.concatenate([jnp.sign(W_g).T, jnp.sign(W_u).T],
                           axis=1).astype(jnp.bfloat16)           # (D, 2D)
    w_d = jnp.sign(W_d).T.astype(jnp.bfloat16)                    # (D, D)
    b_gu = jnp.concatenate([b_g, b_u]).reshape(1, 2 * D).astype(jnp.float32)
    b_d2 = b_d.reshape(1, D).astype(jnp.float32)

    # Whole problem fits comfortably in VMEM at these sizes -> a single grid
    # step (no per-step overhead; D % 128 == 0 so every load/store is a full,
    # unmasked 128-lane access and the output slab is lane-dense).
    out = pl.pallas_call(
        _glu_kernel,
        out_shape=jax.ShapeDtypeStruct((N, D), jnp.float32),
        grid_spec=pltpu.PrefetchScalarGridSpec(
            num_scalar_prefetch=0,
            grid=(1,),
            in_specs=[
                pl.BlockSpec((N, D), lambda i: (0, 0)),
                pl.BlockSpec((D, 2 * D), lambda i: (0, 0)),
                pl.BlockSpec((D, D), lambda i: (0, 0)),
                pl.BlockSpec((1, 2 * D), lambda i: (0, 0)),
                pl.BlockSpec((1, D), lambda i: (0, 0)),
            ],
            out_specs=pl.BlockSpec((N, D), lambda i: (0, 0)),
        ),
        compiler_params=pltpu.CompilerParams(
            dimension_semantics=("arbitrary",),
        ),
    )(xf, w_gu, w_d, b_gu, b_d2)
    return out.reshape(*lead, D)


# ----------------------------------------------------------------------------
# literal pure-JAX reference of the torch module (for verification)
# ----------------------------------------------------------------------------
def _ref_act_quant(x):
    x = jnp.where(jnp.isnan(x), 0.0, x)
    amax = jnp.max(jnp.abs(x))
    scale = jnp.where((amax == 0.0) | jnp.isnan(amax), 1.0, amax / QMAX)
    return jnp.clip(jnp.round(x / scale), QMIN, QMAX) * scale, scale


def ref_glu(x, W_g, W_u, W_d, b_g, b_u, b_d):
    x = _rms_norm(x)
    x, _ = _ref_act_quant(x)

    def mmfree(inp, w):
        q, _ = _ref_act_quant(inp)
        return jnp.dot(q, jnp.sign(w).T, preferred_element_type=jnp.float32)

    g = mmfree(x, W_g) + b_g
    u = mmfree(x, W_u) + b_u
    g = g * jax.nn.sigmoid(g)
    p = g * u
    _, p_scale = _ref_act_quant(p)                  # final quant step, for tolerance
    d = mmfree(p, W_d) + b_d
    return d, p_scale


# ----------------------------------------------------------------------------
if __name__ == "__main__":
    # input_size == hidden_size is required by the module's matmul shapes.
    # D = 128 keeps every block lane-dense; N = B*T = 32 rows (multiple of 8).
    B, T, D = 2, 16, 128

    key = jax.random.PRNGKey(0)
    ks = jax.random.split(key, 7)
    x = jax.random.normal(ks[0], (B, T, D), jnp.float32)
    W_g = jax.random.normal(ks[1], (D, D), jnp.float32)
    W_u = jax.random.normal(ks[2], (D, D), jnp.float32)
    W_d = jax.random.normal(ks[3], (D, D), jnp.float32)
    b_g = jax.random.normal(ks[4], (D,), jnp.float32)
    b_u = jax.random.normal(ks[5], (D,), jnp.float32)
    b_d = jax.random.normal(ks[6], (D,), jnp.float32)

    out = matmul_free_glu(x, W_g, W_u, W_d, b_g, b_u, b_d)
    out = jax.block_until_ready(out)
    assert out.shape == (B, T, D)
    assert bool(jnp.all(jnp.isfinite(out)))

    ref, p_scale = ref_glu(x.reshape(-1, D), W_g, W_u, W_d, b_g, b_u, b_d)
    ref = ref.reshape(B, T, D)
    p_scale = float(p_scale)

    # Tolerance: an intermediate value landing ~exactly on an 8-bit rounding
    # boundary can quantize one code apart between the fused kernel and the
    # reference float path; each flipped code moves an output element by at
    # most one quantization step (p_scale) of the final projection.
    atol = 5e-2 + 4.0 * p_scale
    max_diff = float(jnp.max(jnp.abs(out - ref)))
    mean_diff = float(jnp.mean(jnp.abs(out - ref)))
    assert jnp.allclose(out, ref, atol=atol, rtol=5e-2), \
        f"max diff {max_diff} (atol {atol})"
    assert mean_diff <= 5e-2 * float(jnp.mean(jnp.abs(ref))) + 5e-2, \
        f"mean diff {mean_diff}"

    print("KERNEL_OK")
</pallas_src>

<mosaic_0001>
module attributes {stable_mosaic.version = 11 : i64} {
  func.func @_glu_kernel(%arg0: i32, %arg1: memref<32x128xf32, #tpu.memory_space<vmem>>, %arg2: memref<128x256xbf16, #tpu.memory_space<vmem>>, %arg3: memref<128x128xbf16, #tpu.memory_space<vmem>>, %arg4: memref<1x256xf32, #tpu.memory_space<vmem>>, %arg5: memref<1x128xf32, #tpu.memory_space<vmem>>, %arg6: memref<32x128xf32, #tpu.memory_space<vmem>>) attributes {dimension_semantics = [#tpu.dimension_semantics<arbitrary>], iteration_bounds = array<i64: 1>, scalar_prefetch = 0 : i64, scratch_operands = 0 : i64, tpu.core_type = #tpu.core_type<tc>, window_params = [{pipeline_mode = #tpu.pipeline_mode<synchronous>, transform_indices = @transform_0, window_bounds = array<i64: 32, 128>}, {pipeline_mode = #tpu.pipeline_mode<synchronous>, transform_indices = @transform_1, window_bounds = array<i64: 128, 256>}, {pipeline_mode = #tpu.pipeline_mode<synchronous>, transform_indices = @transform_2, window_bounds = array<i64: 128, 128>}, {pipeline_mode = #tpu.pipeline_mode<synchronous>, transform_indices = @transform_3, window_bounds = array<i64: 1, 256>}, {pipeline_mode = #tpu.pipeline_mode<synchronous>, transform_indices = @transform_4, window_bounds = array<i64: 1, 128>}, {pipeline_mode = #tpu.pipeline_mode<synchronous>, transform_indices = @transform_5, window_bounds = array<i64: 32, 128>}]} {
    %c0 = arith.constant 0 : index
    %c0_0 = arith.constant 0 : index
    %0 = vector.load %arg1[%c0, %c0_0] : memref<32x128xf32, #tpu.memory_space<vmem>>, vector<32x128xf32>
    %cst = arith.constant dense<0.000000e+00> : vector<32xf32>
    %1 = vector.multi_reduction <add>, %0, %cst [1] : vector<32x128xf32> to vector<32xf32>
    %2 = vector.shape_cast %1 : vector<32xf32> to vector<32x1xf32>
    %cst_1 = arith.constant 1.280000e+02 : f32
    %3 = vector.broadcast %cst_1 : f32 to vector<32x1xf32>
    %4 = arith.divf %2, %3 : vector<32x1xf32>
    %5 = vector.broadcast %4 : vector<32x1xf32> to vector<32x128xf32>
    %6 = arith.subf %0, %5 : vector<32x128xf32>
    %7 = arith.mulf %6, %6 : vector<32x128xf32>
    %cst_2 = arith.constant dense<0.000000e+00> : vector<32xf32>
    %8 = vector.multi_reduction <add>, %7, %cst_2 [1] : vector<32x128xf32> to vector<32xf32>
    %9 = vector.shape_cast %8 : vector<32xf32> to vector<32x1xf32>
    %cst_3 = arith.constant 1.280000e+02 : f32
    %10 = vector.broadcast %cst_3 : f32 to vector<32x1xf32>
    %11 = arith.divf %9, %10 : vector<32x1xf32>
    %cst_4 = arith.constant 9.99999993E-9 : f32
    %12 = vector.broadcast %cst_4 : f32 to vector<32x1xf32>
    %13 = arith.addf %11, %12 : vector<32x1xf32>
    %cst_5 = arith.constant 1.000000e-10 : f32
    %14 = vector.broadcast %cst_5 : f32 to vector<32x1xf32>
    %15 = arith.maximumf %13, %14 : vector<32x1xf32>
    %16 = math.rsqrt %15 : vector<32x1xf32>
    %17 = vector.broadcast %4 : vector<32x1xf32> to vector<32x128xf32>
    %18 = arith.subf %0, %17 : vector<32x128xf32>
    %19 = vector.broadcast %16 : vector<32x1xf32> to vector<32x128xf32>
    %20 = arith.mulf %19, %18 : vector<32x128xf32>
    %21 = arith.cmpf one, %20, %20 : vector<32x128xf32>
    %cst_6 = arith.constant 0.000000e+00 : f32
    %22 = vector.broadcast %cst_6 : f32 to vector<32x128xf32>
    %23 = arith.select %21, %22, %20 : vector<32x128xi1>, vector<32x128xf32>
    %24 = math.absf %23 : vector<32x128xf32>
    %25 = vector.shape_cast %24 : vector<32x128xf32> to vector<1x32x128xf32>
    %cst_7 = arith.constant dense<0xFF800000> : vector<1xf32>
    %26 = vector.multi_reduction <maximumf>, %25, %cst_7 [1, 2] : vector<1x32x128xf32> to vector<1xf32>
    %27 = vector.shape_cast %26 : vector<1xf32> to vector<1x1x1xf32>
    %28 = vector.extract %27[0, 0, 0] : f32 from vector<1x1x1xf32>
    %cst_8 = arith.constant 0.000000e+00 : f32
    %29 = arith.cmpf oeq, %28, %cst_8 : f32
    %30 = arith.cmpf one, %28, %28 : f32
    %31 = arith.ori %29, %30 : i1
    %cst_9 = arith.constant 1.270000e+02 : f32
    %32 = arith.divf %28, %cst_9 : f32
    %cst_10 = arith.constant 1.000000e+00 : f32
    %33 = arith.select %31, %cst_10, %32 : f32
    %cst_11 = arith.constant 1.000000e+00 : f32
    %34 = arith.divf %cst_11, %33 : f32
    %35 = vector.broadcast %34 : f32 to vector<32x128xf32>
    %36 = arith.mulf %23, %35 : vector<32x128xf32>
    %37 = math.roundeven %36 : vector<32x128xf32>
    %cst_12 = arith.constant -1.280000e+02 : f32
    %cst_13 = arith.constant 1.270000e+02 : f32
    %38 = vector.broadcast %cst_12 : f32 to vector<32x128xf32>
    %39 = arith.maximumf %38, %37 : vector<32x128xf32>
    %40 = vector.broadcast %cst_13 : f32 to vector<32x128xf32>
    %41 = arith.minimumf %40, %39 : vector<32x128xf32>
    %42 = arith.truncf %41 : vector<32x128xf32> to vector<32x128xbf16>
    %c0_14 = arith.constant 0 : index
    %c0_15 = arith.constant 0 : index
    %43 = vector.load %arg2[%c0_14, %c0_15] : memref<128x256xbf16, #tpu.memory_space<vmem>>, vector<128x256xbf16>
    %cst_16 = arith.constant dense<0.000000e+00> : vector<32x256xf32>
    %44 = tpu.matmul %42, %43, %cst_16 {dimension_numbers = #tpu.dot_dimension_numbers<[1], [0], [0], [1], [0, 0, 1, 1], [], []>} : vector<32x128xbf16>, vector<128x256xbf16>, vector<32x256xf32> -> vector<32x256xf32>
    %45 = vector.broadcast %33 : f32 to vector<32x256xf32>
    %46 = arith.mulf %44, %45 : vector<32x256xf32>
    %c0_17 = arith.constant 0 : index
    %c0_18 = arith.constant 0 : index
    %47 = vector.load %arg4[%c0_17, %c0_18] : memref<1x256xf32, #tpu.memory_space<vmem>>, vector<1x256xf32>
    %48 = vector.broadcast %47 : vector<1x256xf32> to vector<32x256xf32>
    %49 = arith.addf %46, %48 : vector<32x256xf32>
    %50 = vector.extract_strided_slice %49 {offsets = [0, 0], sizes = [32, 128], strides = [1, 1]} : vector<32x256xf32> to vector<32x128xf32>
    %51 = vector.extract_strided_slice %49 {offsets = [0, 128], sizes = [32, 128], strides = [1, 1]} : vector<32x256xf32> to vector<32x128xf32>
    %52 = arith.negf %50 : vector<32x128xf32>
    %53 = math.exp %52 : vector<32x128xf32>
    %cst_19 = arith.constant 1.000000e+00 : f32
    %54 = vector.broadcast %cst_19 : f32 to vector<32x128xf32>
    %55 = arith.addf %54, %53 : vector<32x128xf32>
    %56 = arith.divf %54, %55 : vector<32x128xf32>
    %57 = arith.mulf %50, %56 : vector<32x128xf32>
    %58 = arith.mulf %57, %51 : vector<32x128xf32>
    %59 = arith.cmpf one, %58, %58 : vector<32x128xf32>
    %cst_20 = arith.constant 0.000000e+00 : f32
    %60 = vector.broadcast %cst_20 : f32 to vector<32x128xf32>
    %61 = arith.select %59, %60, %58 : vector<32x128xi1>, vector<32x128xf32>
    %62 = math.absf %61 : vector<32x128xf32>
    %63 = vector.shape_cast %62 : vector<32x128xf32> to vector<1x32x128xf32>
    %cst_21 = arith.constant dense<0xFF800000> : vector<1xf32>
    %64 = vector.multi_reduction <maximumf>, %63, %cst_21 [1, 2] : vector<1x32x128xf32> to vector<1xf32>
    %65 = vector.shape_cast %64 : vector<1xf32> to vector<1x1x1xf32>
    %66 = vector.extract %65[0, 0, 0] : f32 from vector<1x1x1xf32>
    %cst_22 = arith.constant 0.000000e+00 : f32
    %67 = arith.cmpf oeq, %66, %cst_22 : f32
    %68 = arith.cmpf one, %66, %66 : f32
    %69 = arith.ori %67, %68 : i1
    %cst_23 = arith.constant 1.270000e+02 : f32
    %70 = arith.divf %66, %cst_23 : f32
    %cst_24 = arith.constant 1.000000e+00 : f32
    %71 = arith.select %69, %cst_24, %70 : f32
    %cst_25 = arith.constant 1.000000e+00 : f32
    %72 = arith.divf %cst_25, %71 : f32
    %73 = vector.broadcast %72 : f32 to vector<32x128xf32>
    %74 = arith.mulf %61, %73 : vector<32x128xf32>
    %75 = math.roundeven %74 : vector<32x128xf32>
    %cst_26 = arith.constant -1.280000e+02 : f32
    %cst_27 = arith.constant 1.270000e+02 : f32
    %76 = vector.broadcast %cst_26 : f32 to vector<32x128xf32>
    %77 = arith.maximumf %76, %75 : vector<32x128xf32>
    %78 = vector.broadcast %cst_27 : f32 to vector<32x128xf32>
    %79 = arith.minimumf %78, %77 : vector<32x128xf32>
    %80 = arith.truncf %79 : vector<32x128xf32> to vector<32x128xbf16>
    %c0_28 = arith.constant 0 : index
    %c0_29 = arith.constant 0 : index
    %81 = vector.load %arg3[%c0_28, %c0_29] : memref<128x128xbf16, #tpu.memory_space<vmem>>, vector<128x128xbf16>
    %cst_30 = arith.constant dense<0.000000e+00> : vector<32x128xf32>
    %82 = tpu.matmul %80, %81, %cst_30 {dimension_numbers = #tpu.dot_dimension_numbers<[1], [0], [0], [1], [0, 0, 1, 1], [], []>} : vector<32x128xbf16>, vector<128x128xbf16>, vector<32x128xf32> -> vector<32x128xf32>
    %83 = vector.broadcast %71 : f32 to vector<32x128xf32>
    %84 = arith.mulf %82, %83 : vector<32x128xf32>
    %c0_31 = arith.constant 0 : index
    %c0_32 = arith.constant 0 : index
    %85 = vector.load %arg5[%c0_31, %c0_32] : memref<1x128xf32, #tpu.memory_space<vmem>>, vector<1x128xf32>
    %86 = vector.broadcast %85 : vector<1x128xf32> to vector<32x128xf32>
    %87 = arith.addf %84, %86 : vector<32x128xf32>
    %c0_33 = arith.constant 0 : index
    %c0_34 = arith.constant 0 : index
    %88 = vector.load %arg6[%c0_33, %c0_34] : memref<32x128xf32, #tpu.memory_space<vmem>>, vector<32x128xf32>
    tpu.vector_store %arg6[%c0_33, %c0_34], %87 {strides = array<i32>} : memref<32x128xf32, #tpu.memory_space<vmem>>, vector<32x128xf32>,
    return
  }
  func.func @transform_0(%arg0: i32) -> (i32, i32) {
    %c0_i32 = arith.constant 0 : i32
    %c0_i32_0 = arith.constant 0 : i32
    %c0_i32_1 = arith.constant 0 : i32
    return %c0_i32, %c0_i32_0 : i32, i32
  }
  func.func @transform_1(%arg0: i32) -> (i32, i32) {
    %c0_i32 = arith.constant 0 : i32
    %c0_i32_0 = arith.constant 0 : i32
    %c0_i32_1 = arith.constant 0 : i32
    return %c0_i32, %c0_i32_0 : i32, i32
  }
  func.func @transform_2(%arg0: i32) -> (i32, i32) {
    %c0_i32 = arith.constant 0 : i32
    %c0_i32_0 = arith.constant 0 : i32
    %c0_i32_1 = arith.constant 0 : i32
    return %c0_i32, %c0_i32_0 : i32, i32
  }
  func.func @transform_3(%arg0: i32) -> (i32, i32) {
    %c0_i32 = arith.constant 0 : i32
    %c0_i32_0 = arith.constant 0 : i32
    %c0_i32_1 = arith.constant 0 : i32
    return %c0_i32, %c0_i32_0 : i32, i32
  }
  func.func @transform_4(%arg0: i32) -> (i32, i32) {
    %c0_i32 = arith.constant 0 : i32
    %c0_i32_0 = arith.constant 0 : i32
    %c0_i32_1 = arith.constant 0 : i32
    return %c0_i32, %c0_i32_0 : i32, i32
  }
  func.func @transform_5(%arg0: i32) -> (i32, i32) {
    %c0_i32 = arith.constant 0 : i32
    %c0_i32_0 = arith.constant 0 : i32
    %c0_i32_1 = arith.constant 0 : i32
    return %c0_i32, %c0_i32_0 : i32, i32
  }
}

</mosaic_0001>

<llo_original>
// kernel: tpu_custom_call.1
$region0: #{tpu_custom_call.1}
  #allocation0 [shape = 'u32[]', space=smem, size = 0x4, offset = 0x4, fixed_abs, tag = 'smem constant byte address 0x4 - core index']
  #allocation1 [shape = 'u32[72,128]{1,0:T(1,128)}', space=vmem, size = 0x9000, scoped, tag = 'internal scratch']
  %s0 = inlined_call_operand.hbm [shape: f32[32,128], index: 0, kind: input, shape index: {}]
  %s1 = inlined_call_operand.hbm [shape: bf16[128,256], index: 1, kind: input, shape index: {}]
  %s2 = inlined_call_operand.hbm [shape: bf16[128,128], index: 2, kind: input, shape index: {}]
  %s3 = inlined_call_operand.vmem [shape: f32[1,256], index: 3, kind: input, shape index: {}]
  %s4 = inlined_call_operand.vmem [shape: f32[1,128], index: 4, kind: input, shape index: {}]
  %s5 = inlined_call_operand.hbm [shape: f32[32,128], index: 5, kind: output, shape index: {}]
  %s6 = sld [smem:[#allocation0]]
  $region42: #{tpu_custom_call.1} parent=0
    _
  %s8 = ssub.s32 1, %s6
  %s9 = scalar_select 0, %s8, %s6
  $region1: #{tpu_custom_call.1} parent=0
    #allocation2 [shape = 'u8[16384]{0}', space=vmem, size = 0x4000, scoped, tag = 'input window, operand 0, single buffered']
    #allocation3 [shape = 's32[1]{0}', space=sflag, size = 0x4, scoped, tag = 'scoped memory for tpu_custom_call.1']
    #allocation4 [shape = 's32[1]{0}', space=sflag, size = 0x4, scoped, tag = 'scoped memory for tpu_custom_call.1']
    #allocation5 [shape = 'u8[65536]{0}', space=vmem, size = 0x10000, scoped, tag = 'input window, operand 1, single buffered']
    #allocation6 [shape = 's32[1]{0}', space=sflag, size = 0x4, scoped, tag = 'scoped memory for tpu_custom_call.1']
    #allocation7 [shape = 'u8[32768]{0}', space=vmem, size = 0x8000, scoped, tag = 'input window, operand 2, single buffered']
    #allocation8 [shape = 'u8[16384]{0}', space=vmem, size = 0x4000, scoped, tag = 'output window, operand 0, single buffered']
    %10 = vsyncpa [#allocation3], 0
    %11 = vsyncpa [#allocation6], 0
    %12 = vsyncpa [#allocation4], 0
    // Predicated region
    $region2: #{tpu_custom_call.1} parent=1 // pred_check
      _
    $region3: #{tpu_custom_call.1} parent=1 // pred_check_branch
      %14 = sbr.rel (0) target = $region5
    $region4: #{tpu_custom_call.1} parent=1 // pred_region
      %16 = vsyncadd [#allocation3], 0
      %s17 = sshll.u32 %s0, 4
      %s18 = int_to_ptr.hbm [resolvable:$true] %s17
      %s19 = sshll.u32 [#allocation2], 4
      %s20 = int_to_ptr.vmem [resolvable:$true] %s19
      %25 = dma.hbm_to_vmem [thread:$0]  %s18, 512, %s20, [#allocation3], 128, 128, 8
    $region5: #{tpu_custom_call.1} parent=1 // pred_fallthru
      _
    // Predicated region
    $region6: #{tpu_custom_call.1} parent=1 // pred_check
      _
    $region7: #{tpu_custom_call.1} parent=1 // pred_check_branch
      %27 = sbr.rel (0) target = $region9
    $region8: #{tpu_custom_call.1} parent=1 // pred_region
      %29 = vsyncadd [#allocation6], 0
      %s30 = sshll.u32 %s1, 4
      %s31 = int_to_ptr.hbm [resolvable:$true] %s30
      %s32 = sshll.u32 [#allocation5], 4
      %s33 = int_to_ptr.vmem [resolvable:$true] %s32
      %38 = dma.hbm_to_vmem [thread:$0]  %s31, 2048, %s33, [#allocation6], 128, 128, 8
    $region9: #{tpu_custom_call.1} parent=1 // pred_fallthru
      _
    // Predicated region
    $region10: #{tpu_custom_call.1} parent=1 // pred_check
      _
    $region11: #{tpu_custom_call.1} parent=1 // pred_check_branch
      %40 = sbr.rel (0) target = $region13
    $region12: #{tpu_custom_call.1} parent=1 // pred_region
      %42 = vsyncadd [#allocation6], 0
      %s43 = sshll.u32 %s2, 4
      %s44 = int_to_ptr.hbm [resolvable:$true] %s43
      %s45 = sshll.u32 [#allocation7], 4
      %s46 = int_to_ptr.vmem [resolvable:$true] %s45
      %51 = dma.hbm_to_vmem [thread:$0]  %s44, 1024, %s46, [#allocation6], 64, 64, 4
    $region13: #{tpu_custom_call.1} parent=1 // pred_fallthru
      _
    // Predicated region
    $region14: #{tpu_custom_call.1} parent=1 // pred_check
      _
    $region15: #{tpu_custom_call.1} parent=1 // pred_check_branch
      %53 = sbr.rel (0) target = $region17
    $region16: #{tpu_custom_call.1} parent=1 // pred_region
      _
    $region17: #{tpu_custom_call.1} parent=1 // pred_fallthru
      _
    // Predicated region
    $region18: #{tpu_custom_call.1} parent=1 // pred_check
      _
    $region19: #{tpu_custom_call.1} parent=1 // pred_check_branch
      %55 = sbr.rel (0) target = $region21
    $region20: #{tpu_custom_call.1} parent=1 // pred_region
      _
    $region21: #{tpu_custom_call.1} parent=1 // pred_fallthru
      _
    // Predicated region
    $region22: #{tpu_custom_call.1} parent=1 // pred_check
      _
    $region23: #{tpu_custom_call.1} parent=1 // pred_check_branch
      %57 = sbr.rel (0) target = $region25
    $region24: #{tpu_custom_call.1} parent=1 // pred_region
      %59 = dma.done [#allocation3], 512
    $region25: #{tpu_custom_call.1} parent=1 // pred_fallthru
      _
    // Predicated region
    $region26: #{tpu_custom_call.1} parent=1 // pred_check
      _
    $region27: #{tpu_custom_call.1} parent=1 // pred_check_branch
      %61 = sbr.rel (0) target = $region29
    $region28: #{tpu_custom_call.1} parent=1 // pred_region
      %63 = dma.done [#allocation6], 2048
    $region29: #{tpu_custom_call.1} parent=1 // pred_fallthru
      _
    // Predicated region
    $region30: #{tpu_custom_call.1} parent=1 // pred_check
      _
    $region31: #{tpu_custom_call.1} parent=1 // pred_check_branch
      %65 = sbr.rel (0) target = $region33
    $region32: #{tpu_custom_call.1} parent=1 // pred_region
      %67 = dma.done [#allocation6], 1024
    $region33: #{tpu_custom_call.1} parent=1 // pred_fallthru
      _
    %v68 = vld [vmem:[#allocation2] sm:$0xff]
    %v69 = vld [vmem:[#allocation2 + $0x8] sm:$0xff]
    %v70 = vld [vmem:[#allocation2 + $0x10] sm:$0xff]
    %v71 = vld [vmem:[#allocation2 + $0x18] sm:$0xff]
    %72 = vadd.xlane.f32.xlu0 %v68
    %v73 = vpop.xlane.xlu0 %72
    %74 = vadd.xlane.f32.xlu0 %v69
    %v75 = vpop.xlane.xlu0 %74
    %76 = vadd.xlane.f32.xlu0 %v70
    %v77 = vpop.xlane.xlu0 %76
    %78 = vadd.xlane.f32.xlu0 %v71
    %v79 = vpop.xlane.xlu0 %78
    %v80 = vrcp.pop 128.0
    %v81 = vmul.f32 128.0, %v80
    %v82 = vsub.f32 1.0, %v81
    %v83 = vmul.f32 %v80, %v82
    %v84 = vadd.f32 %v80, %v83
    %vm85 = vweird.f32 %v80
    %v86 = vsel %vm85, %v80, %v84
    %v87 = vmul.f32 %v73, %v86
    %v88 = vmul.f32 %v75, %v86
    %v89 = vmul.f32 %v77, %v86
    %v90 = vmul.f32 %v79, %v86
    %v91 = vsub.f32 %v68, %v87
    %v92 = vsub.f32 %v69, %v88
    %v93 = vsub.f32 %v70, %v89
    %v94 = vsub.f32 %v71, %v90
    %v95 = vmul.f32 %v91, %v91
    %v96 = vmul.f32 %v92, %v92
    %v97 = vmul.f32 %v93, %v93
    %v98 = vmul.f32 %v94, %v94
    %99 = vadd.xlane.f32.xlu0 %v95
    %v100 = vpop.xlane.xlu0 %99
    %101 = vadd.xlane.f32.xlu0 %v96
    %v102 = vpop.xlane.xlu0 %101
    %103 = vadd.xlane.f32.xlu0 %v97
    %v104 = vpop.xlane.xlu0 %103
    %105 = vadd.xlane.f32.xlu0 %v98
    %v106 = vpop.xlane.xlu0 %105
    %v107 = vmul.f32 %v100, %v86
    %v108 = vmul.f32 %v102, %v86
    %v109 = vmul.f32 %v104, %v86
    %v110 = vmul.f32 %v106, %v86
    %v111 = vadd.f32 %v107, 1e-08
    %v112 = vadd.f32 %v108, 1e-08
    %v113 = vadd.f32 %v109, 1e-08
    %v114 = vadd.f32 %v110, 1e-08
    %v115 = vmax.f32 %v111, 1e-10
    %v116 = vmax.f32 %v112, 1e-10
    %v117 = vmax.f32 %v113, 1e-10
    %v118 = vmax.f32 %v114, 1e-10
    %v119 = vrsqrt.pop %v115
    %v120 = vmul.f32 %v119, %v115
    %v121 = vmul.f32 %v120, %v119
    %v122 = vmul.f32 0.5, %v121
    %v123 = vsub.f32 1.5, %v122
    %v124 = vmul.f32 %v119, %v123
    %vm125 = vweird.f32 %v115
    %vm126 = vweird.f32 %v119
    %vm127 = vmor %vm125, %vm126
    %v128 = vsel %vm127, %v119, %v124
    %v129 = vrsqrt.pop %v116
    %v130 = vmul.f32 %v129, %v116
    %v131 = vmul.f32 %v130, %v129
    %v132 = vmul.f32 0.5, %v131
    %v133 = vsub.f32 1.5, %v132
    %v134 = vmul.f32 %v129, %v133
    %vm135 = vweird.f32 %v116
    %vm136 = vweird.f32 %v129
    %vm137 = vmor %vm135, %vm136
    %v138 = vsel %vm137, %v129, %v134
    %v139 = vrsqrt.pop %v117
    %v140 = vmul.f32 %v139, %v117
    %v141 = vmul.f32 %v140, %v139
    %v142 = vmul.f32 0.5, %v141
    %v143 = vsub.f32 1.5, %v142
    %v144 = vmul.f32 %v139, %v143
    %vm145 = vweird.f32 %v117
    %vm146 = vweird.f32 %v139
    %vm147 = vmor %vm145, %vm146
    %v148 = vsel %vm147, %v139, %v144
    %v149 = vrsqrt.pop %v118
    %v150 = vmul.f32 %v149, %v118
    %v151 = vmul.f32 %v150, %v149
    %v152 = vmul.f32 0.5, %v151
    %v153 = vsub.f32 1.5, %v152
    %v154 = vmul.f32 %v149, %v153
    %vm155 = vweird.f32 %v118
    %vm156 = vweird.f32 %v149
    %vm157 = vmor %vm155, %vm156
    %v158 = vsel %vm157, %v149, %v154
    %v159 = vmul.f32 %v128, %v91
    %v160 = vmul.f32 %v138, %v92
    %v161 = vmul.f32 %v148, %v93
    %v162 = vmul.f32 %v158, %v94
    %vm163 = vcmp.ne.f32.partialorder %v159, %v159
    %vm164 = vcmp.ne.f32.partialorder %v160, %v160
    %vm165 = vcmp.ne.f32.partialorder %v161, %v161
    %vm166 = vcmp.ne.f32.partialorder %v162, %v162
    %v167 = vsel %vm163, 0.0, %v159
    %v168 = vsel %vm164, 0.0, %v160
    %v169 = vsel %vm165, 0.0, %v161
    %v170 = vsel %vm166, 0.0, %v162
    %v171 = vand.u32 2147483647, %v167
    %v172 = vand.u32 2147483647, %v168
    %v173 = vand.u32 2147483647, %v169
    %v174 = vand.u32 2147483647, %v170
    %v175 = vmax.f32 %v171, %v172
    %v176 = vmax.f32 %v173, %v174
    %v177 = vmax.f32 %v175, %v176
    %178 = vmax.xlane.f32.xlu0 %v177
    %v179 = vpop.xlane.xlu0 %178
    %v180 = vrot.slane %v179, 4
    %v181 = vmax.f32 %v179, %v180
    %v182 = vrot.slane %v181, 2
    %v183 = vmax.f32 %v181, %v182
    %v184 = vrot.slane %v183, 1
    %v185 = vmax.f32 %v183, %v184
    %s186 = vtos %v185
    %p187 = scmp.eq.f32.partialorder %s186, 0.0
    %p188 = scmp.ne.f32.partialorder %s186, %s186
    %p189 = por %p187, %p188
    %v190 = vrcp.pop 127.0
    %v191 = vmul.f32 127.0, %v190
    %v192 = vsub.f32 1.0, %v191
    %v193 = vmul.f32 %v190, %v192
    %v194 = vadd.f32 %v190, %v193
    %vm195 = vweird.f32 %v190
    %v196 = vsel %vm195, %v190, %v194
    %s197 = vtos %v196
    %s198 = smul.f32 %s186, %s197
    %s199 = scalar_select %p189, 1.0, %s198
    %v200 = vstv %s199
    %v201 = vrcp.pop %v200
    %v202 = vmul.f32 %v200, %v201
    %v203 = vsub.f32 1.0, %v202
    %v204 = vmul.f32 %v201, %v203
    %v205 = vadd.f32 %v201, %v204
    %vm206 = vweird.f32 %v200
    %vm207 = vweird.f32 %v201
    %vm208 = vmor %vm206, %vm207
    %v209 = vsel %vm208, %v201, %v205
    %v210 = vand.u32 2147483647, %v200
    %vm211 = vcmp.eq.f32.partialorder %v210, 8.507059e+37
    %v212 = vand.u32 %v200, 2147483648
    %v213 = vor.u32 1.1754944e-38, %v212
    %v214 = vsel %vm211, %v213, %v209
    %s215 = vtos %v214
    %v216 = vstv %s215
    %v217 = vmul.f32 %v167, %v216
    %v218 = vmul.f32 %v168, %v216
    %v219 = vmul.f32 %v169, %v216
    %v220 = vmul.f32 %v170, %v216
    %v221 = vround.ne.pseudo %v217
    %v222 = vround.ne.pseudo %v218
    %v223 = vround.ne.pseudo %v219
    %v224 = vround.ne.pseudo %v220
    %v225 = vmax.f32 %v221, -128.0
    %v226 = vmax.f32 %v222, -128.0
    %v227 = vmax.f32 %v223, -128.0
    %v228 = vmax.f32 %v224, -128.0
    %v229 = vmin.f32 %v225, 127.0
    %v230 = vmin.f32 %v226, 127.0
    %v231 = vmin.f32 %v227, 127.0
    %v232 = vmin.f32 %v228, 127.0
    %v233 = vpack.c.bf16 %v230, %v229
    %v234 = vpack.c.bf16 %v232, %v231
    %v235 = vld [vmem:[#allocation5] sm:$0xff]
    %v236 = vld [vmem:[#allocation5 + $0x8] sm:$0xff]
    %v237 = vld [vmem:[#allocation5 + $0x10] sm:$0xff]
    %v238 = vld [vmem:[#allocation5 + $0x18] sm:$0xff]
    %v239 = vld [vmem:[#allocation5 + $0x20] sm:$0xff]
    %v240 = vld [vmem:[#allocation5 + $0x28] sm:$0xff]
    %v241 = vld [vmem:[#allocation5 + $0x30] sm:$0xff]
    %v242 = vld [vmem:[#allocation5 + $0x38] sm:$0xff]
    %v243 = vld [vmem:[#allocation5 + $0x40] sm:$0xff]
    %v244 = vld [vmem:[#allocation5 + $0x48] sm:$0xff]
    %v245 = vld [vmem:[#allocation5 + $0x50] sm:$0xff]
    %v246 = vld [vmem:[#allocation5 + $0x58] sm:$0xff]
    %v247 = vld [vmem:[#allocation5 + $0x60] sm:$0xff]
    %v248 = vld [vmem:[#allocation5 + $0x68] sm:$0xff]
    %v249 = vld [vmem:[#allocation5 + $0x70] sm:$0xff]
    %v250 = vld [vmem:[#allocation5 + $0x78] sm:$0xff]
    %v267 = vunpack.c.l.b16 %v235
    %v268 = vunpack.c.h.b16 %v235
    %v269 = vunpack.c.l.b16 %v236
    %v270 = vunpack.c.h.b16 %v236
    %v271 = vunpack.c.l.b16 %v237
    %v272 = vunpack.c.h.b16 %v237
    %v273 = vunpack.c.l.b16 %v238
    %v274 = vunpack.c.h.b16 %v238
    %v275 = vunpack.c.l.b16 %v239
    %v276 = vunpack.c.h.b16 %v239
    %v277 = vunpack.c.l.b16 %v240
    %v278 = vunpack.c.h.b16 %v240
    %v279 = vunpack.c.l.b16 %v241
    %v280 = vunpack.c.h.b16 %v241
    %v281 = vunpack.c.l.b16 %v242
    %v282 = vunpack.c.h.b16 %v242
    %v283 = vunpack.c.l.b16 %v243
    %v284 = vunpack.c.h.b16 %v243
    %v285 = vunpack.c.l.b16 %v244
    %v286 = vunpack.c.h.b16 %v244
    %v287 = vunpack.c.l.b16 %v245
    %v288 = vunpack.c.h.b16 %v245
    %v289 = vunpack.c.l.b16 %v246
    %v290 = vunpack.c.h.b16 %v246
    %v291 = vunpack.c.l.b16 %v247
    %v292 = vunpack.c.h.b16 %v247
    %v293 = vunpack.c.l.b16 %v248
    %v294 = vunpack.c.h.b16 %v248
    %v295 = vunpack.c.l.b16 %v249
    %v296 = vunpack.c.h.b16 %v249
    %v297 = vunpack.c.l.b16 %v250
    %v298 = vunpack.c.h.b16 %v250
    %v299 = vpack.c.b16 %v269, %v267
    %v300 = vpack.c.b16 %v270, %v268
    %v301 = vpack.c.b16 %v273, %v271
    %v302 = vpack.c.b16 %v274, %v272
    %v303 = vpack.c.b16 %v277, %v275
    %v304 = vpack.c.b16 %v278, %v276
    %v305 = vpack.c.b16 %v281, %v279
    %v306 = vpack.c.b16 %v282, %v280
    %v307 = vpack.c.b16 %v285, %v283
    %v308 = vpack.c.b16 %v286, %v284
    %v309 = vpack.c.b16 %v289, %v287
    %v310 = vpack.c.b16 %v290, %v288
    %v311 = vpack.c.b16 %v293, %v291
    %v312 = vpack.c.b16 %v294, %v292
    %v313 = vpack.c.b16 %v297, %v295
    %v314 = vpack.c.b16 %v298, %v296
    %331 = vmatpush.bf16.msra.mxu0 %v313
    %332 = vmatpush.bf16.msra.mxu0 %v311
    %333 = vmatpush.bf16.msra.mxu0 %v309
    %334 = vmatpush.bf16.msra.mxu0 %v307
    %335 = vmatpush.bf16.msra.mxu0 %v305
    %336 = vmatpush.bf16.msra.mxu0 %v303
    %337 = vmatpush.bf16.msra.mxu0 %v301
    %338 = vmatpush.bf16.msra.mxu0 %v299
    %339 = vmatmul.bf16.gmra.mxu0 %v233
    %v340 = vpop.f32.mrf.mxu0
    %v341 = vadd.f32 0.0, %v340
    %v342 = vpop.f32.mrf.mxu0
    %v343 = vadd.f32 0.0, %v342
    %344 = vmatmul.bf16.gmra.mxu0 %v234
    %v345 = vpop.f32.mrf.mxu0
    %v346 = vadd.f32 0.0, %v345
    %v347 = vpop.f32.mrf.mxu0
    %v348 = vadd.f32 0.0, %v347
    %349 = vdwg.mxu0
    %350 = vmatpush.bf16.msra.mxu0 %v314
    %351 = vmatpush.bf16.msra.mxu0 %v312
    %352 = vmatpush.bf16.msra.mxu0 %v310
    %353 = vmatpush.bf16.msra.mxu0 %v308
    %354 = vmatpush.bf16.msra.mxu0 %v306
    %355 = vmatpush.bf16.msra.mxu0 %v304
    %356 = vmatpush.bf16.msra.mxu0 %v302
    %357 = vmatpush.bf16.msra.mxu0 %v300
    %358 = vmatmul.bf16.gmra.mxu0 %v233
    %v359 = vpop.f32.mrf.mxu0
    %v360 = vadd.f32 0.0, %v359
    %v361 = vpop.f32.mrf.mxu0
    %v362 = vadd.f32 0.0, %v361
    %363 = vmatmul.bf16.gmra.mxu0 %v234
    %v364 = vpop.f32.mrf.mxu0
    %v365 = vadd.f32 0.0, %v364
    %v366 = vpop.f32.mrf.mxu0
    %v367 = vadd.f32 0.0, %v366
    %368 = vdwg.mxu0
    %v369 = vstv %s199
    %v370 = vmul.f32 %v341, %v369
    %v371 = vmul.f32 %v360, %v369
    %v372 = vmul.f32 %v343, %v369
    %v373 = vmul.f32 %v362, %v369
    %v374 = vmul.f32 %v346, %v369
    %v375 = vmul.f32 %v365, %v369
    %v376 = vmul.f32 %v348, %v369
    %v377 = vmul.f32 %v367, %v369
    %v378 = vld [vmem:[%s3] sm:$0x3]
    %v380 = vperm.slane %v378, 0
    %v381 = vperm.slane %v378, 1
    %v384 = vadd.f32 %v370, %v380
    %v385 = vadd.f32 %v371, %v381
    %v386 = vadd.f32 %v372, %v380
    %v387 = vadd.f32 %v373, %v381
    %v388 = vadd.f32 %v374, %v380
    %v389 = vadd.f32 %v375, %v381
    %v390 = vadd.f32 %v376, %v380
    %v391 = vadd.f32 %v377, %v381
    %v392 = vxor.u32 %v384, 2147483648
    %v393 = vxor.u32 %v386, 2147483648
    %v394 = vxor.u32 %v388, 2147483648
    %v395 = vxor.u32 %v390, 2147483648
    %v396 = vmul.f32 %v392, 1.442695
    %v397 = vpow.pop %v396
    %v398 = vmul.f32 %v393, 1.442695
    %v399 = vpow.pop %v398
    %v400 = vmul.f32 %v394, 1.442695
    %v401 = vpow.pop %v400
    %v402 = vmul.f32 %v395, 1.442695
    %v403 = vpow.pop %v402
    %v404 = vadd.f32 %v397, 1.0
    %v405 = vadd.f32 %v399, 1.0
    %v406 = vadd.f32 %v401, 1.0
    %v407 = vadd.f32 %v403, 1.0
    %v408 = vrcp.pop %v404
    %v409 = vmul.f32 %v404, %v408
    %v410 = vsub.f32 1.0, %v409
    %v411 = vmul.f32 %v408, %v410
    %v412 = vadd.f32 %v408, %v411
    %vm413 = vweird.f32 %v404
    %vm414 = vweird.f32 %v408
    %vm415 = vmor %vm413, %vm414
    %v416 = vsel %vm415, %v408, %v412
    %v417 = vand.u32 2147483647, %v404
    %vm418 = vcmp.eq.f32.partialorder %v417, 8.507059e+37
    %v419 = vand.u32 %v404, 2147483648
    %v420 = vor.u32 1.1754944e-38, %v419
    %v421 = vsel %vm418, %v420, %v416
    %v422 = vmul.f32 1.0, %v421
    %v423 = vrcp.pop %v405
    %v424 = vmul.f32 %v405, %v423
    %v425 = vsub.f32 1.0, %v424
    %v426 = vmul.f32 %v423, %v425
    %v427 = vadd.f32 %v423, %v426
    %vm428 = vweird.f32 %v405
    %vm429 = vweird.f32 %v423
    %vm430 = vmor %vm428, %vm429
    %v431 = vsel %vm430, %v423, %v427
    %v432 = vand.u32 2147483647, %v405
    %vm433 = vcmp.eq.f32.partialorder %v432, 8.507059e+37
    %v434 = vand.u32 %v405, 2147483648
    %v435 = vor.u32 1.1754944e-38, %v434
    %v436 = vsel %vm433, %v435, %v431
    %v437 = vmul.f32 1.0, %v436
    %v438 = vrcp.pop %v406
    %v439 = vmul.f32 %v406, %v438
    %v440 = vsub.f32 1.0, %v439
    %v441 = vmul.f32 %v438, %v440
    %v442 = vadd.f32 %v438, %v441
    %vm443 = vweird.f32 %v406
    %vm444 = vweird.f32 %v438
    %vm445 = vmor %vm443, %vm444
    %v446 = vsel %vm445, %v438, %v442
    %v447 = vand.u32 2147483647, %v406
    %vm448 = vcmp.eq.f32.partialorder %v447, 8.507059e+37
    %v449 = vand.u32 %v406, 2147483648
    %v450 = vor.u32 1.1754944e-38, %v449
    %v451 = vsel %vm448, %v450, %v446
    %v452 = vmul.f32 1.0, %v451
    %v453 = vrcp.pop %v407
    %v454 = vmul.f32 %v407, %v453
    %v455 = vsub.f32 1.0, %v454
    %v456 = vmul.f32 %v453, %v455
    %v457 = vadd.f32 %v453, %v456
    %vm458 = vweird.f32 %v407
    %vm459 = vweird.f32 %v453
    %vm460 = vmor %vm458, %vm459
    %v461 = vsel %vm460, %v453, %v457
    %v462 = vand.u32 2147483647, %v407
    %vm463 = vcmp.eq.f32.partialorder %v462, 8.507059e+37
    %v464 = vand.u32 %v407, 2147483648
    %v465 = vor.u32 1.1754944e-38, %v464
    %v466 = vsel %vm463, %v465, %v461
    %v467 = vmul.f32 1.0, %v466
    %v468 = vmul.f32 %v384, %v422
    %v469 = vmul.f32 %v386, %v437
    %v470 = vmul.f32 %v388, %v452
    %v471 = vmul.f32 %v390, %v467
    %v472 = vmul.f32 %v468, %v385
    %v473 = vmul.f32 %v469, %v387
    %v474 = vmul.f32 %v470, %v389
    %v475 = vmul.f32 %v471, %v391
    %vm476 = vcmp.ne.f32.partialorder %v472, %v472
    %vm477 = vcmp.ne.f32.partialorder %v473, %v473
    %vm478 = vcmp.ne.f32.partialorder %v474, %v474
    %vm479 = vcmp.ne.f32.partialorder %v475, %v475
    %v480 = vsel %vm476, 0.0, %v472
    %v481 = vsel %vm477, 0.0, %v473
    %v482 = vsel %vm478, 0.0, %v474
    %v483 = vsel %vm479, 0.0, %v475
    %v484 = vand.u32 2147483647, %v480
    %v485 = vand.u32 2147483647, %v481
    %v486 = vand.u32 2147483647, %v482
    %v487 = vand.u32 2147483647, %v483
    %v488 = vmax.f32 %v484, %v485
    %v489 = vmax.f32 %v486, %v487
    %v490 = vmax.f32 %v488, %v489
    %491 = vmax.xlane.f32.xlu0 %v490
    %v492 = vpop.xlane.xlu0 %491
    %v493 = vrot.slane %v492, 4
    %v494 = vmax.f32 %v492, %v493
    %v495 = vrot.slane %v494, 2
    %v496 = vmax.f32 %v494, %v495
    %v497 = vrot.slane %v496, 1
    %v498 = vmax.f32 %v496, %v497
    %s499 = vtos %v498
    %p500 = scmp.eq.f32.partialorder %s499, 0.0
    %p501 = scmp.ne.f32.partialorder %s499, %s499
    %p502 = por %p500, %p501
    %v503 = vrcp.pop 127.0
    %v504 = vmul.f32 127.0, %v503
    %v505 = vsub.f32 1.0, %v504
    %v506 = vmul.f32 %v503, %v505
    %v507 = vadd.f32 %v503, %v506
    %vm508 = vweird.f32 %v503
    %v509 = vsel %vm508, %v503, %v507
    %s510 = vtos %v509
    %s511 = smul.f32 %s499, %s510
    %s512 = scalar_select %p502, 1.0, %s511
    %v513 = vstv %s512
    %v514 = vrcp.pop %v513
    %v515 = vmul.f32 %v513, %v514
    %v516 = vsub.f32 1.0, %v515
    %v517 = vmul.f32 %v514, %v516
    %v518 = vadd.f32 %v514, %v517
    %vm519 = vweird.f32 %v513
    %vm520 = vweird.f32 %v514
    %vm521 = vmor %vm519, %vm520
    %v522 = vsel %vm521, %v514, %v518
    %v523 = vand.u32 2147483647, %v513
    %vm524 = vcmp.eq.f32.partialorder %v523, 8.507059e+37
    %v525 = vand.u32 %v513, 2147483648
    %v526 = vor.u32 1.1754944e-38, %v525
    %v527 = vsel %vm524, %v526, %v522
    %s528 = vtos %v527
    %v529 = vstv %s528
    %v530 = vmul.f32 %v480, %v529
    %v531 = vmul.f32 %v481, %v529
    %v532 = vmul.f32 %v482, %v529
    %v533 = vmul.f32 %v483, %v529
    %v534 = vround.ne.pseudo %v530
    %v535 = vround.ne.pseudo %v531
    %v536 = vround.ne.pseudo %v532
    %v537 = vround.ne.pseudo %v533
    %v538 = vmax.f32 %v534, -128.0
    %v539 = vmax.f32 %v535, -128.0
    %v540 = vmax.f32 %v536, -128.0
    %v541 = vmax.f32 %v537, -128.0
    %v542 = vmin.f32 %v538, 127.0
    %v543 = vmin.f32 %v539, 127.0
    %v544 = vmin.f32 %v540, 127.0
    %v545 = vmin.f32 %v541, 127.0
    %v546 = vpack.c.bf16 %v543, %v542
    %v547 = vpack.c.bf16 %v545, %v544
    %v548 = vld [vmem:[#allocation7] sm:$0xf]
    %v549 = vld [vmem:[#allocation7 + $0x4] sm:$0xf]
    %v550 = vld [vmem:[#allocation7 + $0x8] sm:$0xf]
    %v551 = vld [vmem:[#allocation7 + $0xc] sm:$0xf]
    %v552 = vld [vmem:[#allocation7 + $0x10] sm:$0xf]
    %v553 = vld [vmem:[#allocation7 + $0x14] sm:$0xf]
    %v554 = vld [vmem:[#allocation7 + $0x18] sm:$0xf]
    %v555 = vld [vmem:[#allocation7 + $0x1c] sm:$0xf]
    %v556 = vld [vmem:[#allocation7 + $0x20] sm:$0xf]
    %v557 = vld [vmem:[#allocation7 + $0x24] sm:$0xf]
    %v558 = vld [vmem:[#allocation7 + $0x28] sm:$0xf]
    %v559 = vld [vmem:[#allocation7 + $0x2c] sm:$0xf]
    %v560 = vld [vmem:[#allocation7 + $0x30] sm:$0xf]
    %v561 = vld [vmem:[#allocation7 + $0x34] sm:$0xf]
    %v562 = vld [vmem:[#allocation7 + $0x38] sm:$0xf]
    %v563 = vld [vmem:[#allocation7 + $0x3c] sm:$0xf]
    %v580 = vunpack.c.l.b16 %v548
    %v581 = vunpack.c.l.b16 %v549
    %v582 = vunpack.c.l.b16 %v550
    %v583 = vunpack.c.l.b16 %v551
    %v584 = vunpack.c.l.b16 %v552
    %v585 = vunpack.c.l.b16 %v553
    %v586 = vunpack.c.l.b16 %v554
    %v587 = vunpack.c.l.b16 %v555
    %v588 = vunpack.c.l.b16 %v556
    %v589 = vunpack.c.l.b16 %v557
    %v590 = vunpack.c.l.b16 %v558
    %v591 = vunpack.c.l.b16 %v559
    %v592 = vunpack.c.l.b16 %v560
    %v593 = vunpack.c.l.b16 %v561
    %v594 = vunpack.c.l.b16 %v562
    %v595 = vunpack.c.l.b16 %v563
    %v596 = vpack.c.b16 %v581, %v580
    %v597 = vpack.c.b16 %v583, %v582
    %v598 = vpack.c.b16 %v585, %v584
    %v599 = vpack.c.b16 %v587, %v586
    %v600 = vpack.c.b16 %v589, %v588
    %v601 = vpack.c.b16 %v591, %v590
    %v602 = vpack.c.b16 %v593, %v592
    %v603 = vpack.c.b16 %v595, %v594
    %612 = vmatpush.bf16.msra.mxu0 %v603
    %613 = vmatpush.bf16.msra.mxu0 %v602
    %614 = vmatpush.bf16.msra.mxu0 %v601
    %615 = vmatpush.bf16.msra.mxu0 %v600
    %616 = vmatpush.bf16.msra.mxu0 %v599
    %617 = vmatpush.bf16.msra.mxu0 %v598
    %618 = vmatpush.bf16.msra.mxu0 %v597
    %619 = vmatpush.bf16.msra.mxu0 %v596
    %620 = vmatmul.bf16.gmra.mxu0 %v546
    %v621 = vpop.f32.mrf.mxu0
    %v622 = vadd.f32 0.0, %v621
    %v623 = vpop.f32.mrf.mxu0
    %v624 = vadd.f32 0.0, %v623
    %625 = vmatmul.bf16.gmra.mxu0 %v547
    %v626 = vpop.f32.mrf.mxu0
    %v627 = vadd.f32 0.0, %v626
    %v628 = vpop.f32.mrf.mxu0
    %v629 = vadd.f32 0.0, %v628
    %630 = vdwg.mxu0
    %v631 = vstv %s512
    %v632 = vmul.f32 %v622, %v631
    %v633 = vmul.f32 %v624, %v631
    %v634 = vmul.f32 %v627, %v631
    %v635 = vmul.f32 %v629, %v631
    %v636 = vld [vmem:[%s4] sm:$0x1]
    %v638 = vperm.slane %v636, 0
    %v640 = vadd.f32 %v632, %v638
    %v641 = vadd.f32 %v633, %v638
    %v642 = vadd.f32 %v634, %v638
    %v643 = vadd.f32 %v635, %v638
    %644 = vst [vmem:[#allocation8] sm:$0xff] %v640
    %645 = vst [vmem:[#allocation8 + $0x8] sm:$0xff] %v641
    %646 = vst [vmem:[#allocation8 + $0x10] sm:$0xff] %v642
    %647 = vst [vmem:[#allocation8 + $0x18] sm:$0xff] %v643
    // Predicated region
    $region34: #{tpu_custom_call.1} parent=1 // pred_check
      _
    $region35: #{tpu_custom_call.1} parent=1 // pred_check_branch
      %649 = sbr.rel (0) target = $region37
    $region36: #{tpu_custom_call.1} parent=1 // pred_region
      %651 = vsyncadd [#allocation4], 0
      %s652 = sshll.u32 [#allocation8], 4
      %s653 = int_to_ptr.vmem [resolvable:$true] %s652
      %s654 = sshll.u32 %s5, 4
      %s655 = int_to_ptr.hbm [resolvable:$true] %s654
      %660 = dma.vmem_to_hbm [thread:$0]  %s653, 512, %s655, [#allocation4], 128, 128, 8
    $region37: #{tpu_custom_call.1} parent=1 // pred_fallthru
      _
    // Predicated region
    $region38: #{tpu_custom_call.1} parent=1 // pred_check
      _
    $region39: #{tpu_custom_call.1} parent=1 // pred_check_branch
      %662 = sbr.rel (0) target = $region41
    $region40: #{tpu_custom_call.1} parent=1 // pred_region
      %664 = dma.done [#allocation4], 512
    $region41: #{tpu_custom_call.1} parent=1 // pred_fallthru
      _
    %665 = vsyncpa [#allocation3], 1
    %666 = vsyncpa [#allocation6], 1
    %667 = vsyncpa [#allocation4], 1

</llo_original>
